<compile_context>
chip_gen: v5e
topology: v5e:2x2
jax: 0.10.0
libtpu: 0.0.40
codegen_flags: <defaults>
</compile_context>

<pallas_src>
import jax
import jax.numpy as jnp
from jax.experimental import pallas as pl
from jax.experimental.pallas import tpu as pltpu

_SUBLANES = 8
_LANES = 128


def _make_kernel(rows_total, block_rows, needs_mask):
    """Kernel closure over static tiling parameters."""

    def kernel(logits_ref, target_ref, partial_ref):
        # Native-dtype tiles; upcast to f32 on load so accumulation is f32.
        x = jnp.clip(logits_ref[...].astype(jnp.float32), 0.0, 1.0)
        op = -target_ref[...].astype(jnp.float32) * jnp.log(x + 1e-07)
        # Faithful to torch.where(op > 0, op, 0): NaN/garbage -> 0.
        contrib = jnp.where(op > 0.0, op, 0.0)
        if needs_mask:
            # Last grid step may read rows past the logical array; zero them.
            valid = rows_total - pl.program_id(0) * block_rows
            row_ids = jax.lax.broadcasted_iota(jnp.int32, contrib.shape, 0)
            contrib = jnp.where(row_ids < valid, contrib, 0.0)
        # Per-tile partial sum (one row of lanes): independent per grid step,
        # no serial scalar dependency, tree-style final reduction in wrapper.
        partial_ref[0] = jnp.sum(contrib, axis=0, keepdims=True)

    return kernel


def smooth_cross_entropy(logits, target, *, block_bytes=8 * 1024 * 1024):
    """Pallas implementation of SmoothCrossEntropy.forward (reduction='mean_per_el')."""
    assert logits.shape == target.shape and logits.ndim == 2
    n, c = logits.shape
    total = n * c

    # Lane-dense view when possible (zero-copy reshape of contiguous row-major
    # data -> full 128-lane rows); otherwise tile the natural (N, C) array.
    if total % _LANES == 0:
        rows_total, cols = total // _LANES, _LANES
        logits_v = jnp.reshape(logits, (rows_total, cols))
        target_v = jnp.reshape(target, (rows_total, cols))
    else:
        rows_total, cols = n, c
        logits_v, target_v = logits, target

    item_l = jnp.dtype(logits.dtype).itemsize
    item_t = jnp.dtype(target.dtype).itemsize
    padded_cols = ((cols + _LANES - 1) // _LANES) * _LANES  # VMEM lane padding
    # Sublane rounding so blocks keep packed layout for sub-f32 dtypes.
    sub_round = _SUBLANES * max(1, 4 // max(1, min(item_l, item_t, 4)))

    budget_rows = max(1, block_bytes // (padded_cols * max(item_l, item_t)))
    if rows_total <= budget_rows:
        block_rows = rows_total                 # single block, full extent
    else:
        block_rows = max(sub_round, (budget_rows // sub_round) * sub_round)
        block_rows = min(block_rows, rows_total)
    num_tiles = pl.cdiv(rows_total, block_rows)
    needs_mask = (num_tiles * block_rows) != rows_total

    # 2 inputs x 2 pipeline buffers x block + slack; stays < 64 MiB (v7x).
    block_vmem = block_rows * padded_cols * (item_l + item_t)
    vmem_limit = int(max(32 * 1024 * 1024, 2 * block_vmem + 8 * 1024 * 1024))

    blk = (block_rows, cols)
    partials = pl.pallas_call(
        _make_kernel(rows_total, block_rows, needs_mask),
        out_shape=jax.ShapeDtypeStruct((num_tiles, 1, cols), jnp.float32),
        grid=(num_tiles,),
        in_specs=[
            pl.BlockSpec(blk, lambda i: (i, 0)),
            pl.BlockSpec(blk, lambda i: (i, 0)),
        ],
        out_specs=pl.BlockSpec((1, 1, cols), lambda i: (i, 0, 0)),
        compiler_params=pltpu.CompilerParams(
            # Each grid step writes its own output block -> data parallel.
            # TODO(synk): on v7x switch this axis to pltpu.CORE_PARALLEL so the
            # two TensorCores each take half of the grid (no-op on v5e/v6e).
            dimension_semantics=("parallel",),
            vmem_limit_bytes=vmem_limit,
        ),
    )(logits_v, target_v)

    # Tiny final reduction (num_tiles x 1 x cols f32) + mean-per-element divide.
    return jnp.sum(partials, dtype=jnp.float32) / jnp.float32(n)


def _reference(logits, target):
    x = jnp.clip(logits.astype(jnp.float32), 0.0, 1.0)
    logx = jnp.log(x + 1e-07)
    out_pos = -target.astype(jnp.float32) * logx
    out = jnp.where(out_pos > 0, out_pos, jnp.zeros_like(out_pos))
    return jnp.sum(out) / logits.shape[0]


if __name__ == "__main__":
    key = jax.random.PRNGKey(0)
    k1, k2, k3, k4 = jax.random.split(key, 4)

    # Main config: NxC probability maps (logits are "already softmaxed").
    N, C = 16, 32
    logits = jax.nn.softmax(jax.random.normal(k1, (N, C), dtype=jnp.float32), axis=-1)
    target = jax.nn.softmax(jax.random.normal(k2, (N, C), dtype=jnp.float32), axis=-1)

    loss = jax.block_until_ready(smooth_cross_entropy(logits, target))
    ref = _reference(logits, target)
    assert jnp.allclose(loss, ref, rtol=1e-5, atol=1e-6), (loss, ref)

    # Extra coverage: ragged C (natural-layout path) and multi-tile masked
    # last blocks, forced with tiny block budgets.
    for (n2, c2), bb in (((100, 31), 16 * 1024), ((144, 32), 8 * 1024)):
        lg = jax.nn.softmax(jax.random.normal(k3, (n2, c2), dtype=jnp.float32), axis=-1)
        tg = jax.nn.softmax(jax.random.normal(k4, (n2, c2), dtype=jnp.float32), axis=-1)
        got = jax.block_until_ready(smooth_cross_entropy(lg, tg, block_bytes=bb))
        assert jnp.allclose(got, _reference(lg, tg), rtol=1e-5, atol=1e-6), (n2, c2, got)

    print("KERNEL_OK")
</pallas_src>

<mosaic_0001>
module attributes {stable_mosaic.version = 11 : i64} {
  func.func @kernel(%arg0: i32, %arg1: memref<4x128xf32, #tpu.memory_space<vmem>>, %arg2: memref<4x128xf32, #tpu.memory_space<vmem>>, %arg3: memref<1x1x128xf32, #tpu.memory_space<vmem>>) attributes {dimension_semantics = [#tpu.dimension_semantics<parallel>], iteration_bounds = array<i64: 1>, scalar_prefetch = 0 : i64, scratch_operands = 0 : i64, tpu.core_type = #tpu.core_type<tc>, window_params = [{transform_indices = @transform_0, window_bounds = array<i64: 4, 128>}, {transform_indices = @transform_1, window_bounds = array<i64: 4, 128>}, {transform_indices = @transform_2, window_bounds = array<i64: 1, 1, 128>}]} {
    %c0 = arith.constant 0 : index
    %c0_0 = arith.constant 0 : index
    %0 = vector.load %arg1[%c0, %c0_0] : memref<4x128xf32, #tpu.memory_space<vmem>>, vector<4x128xf32>
    %cst = arith.constant 0.000000e+00 : f32
    %cst_1 = arith.constant 1.000000e+00 : f32
    %1 = vector.broadcast %cst : f32 to vector<4x128xf32>
    %2 = arith.maximumf %1, %0 : vector<4x128xf32>
    %3 = vector.broadcast %cst_1 : f32 to vector<4x128xf32>
    %4 = arith.minimumf %3, %2 : vector<4x128xf32>
    %c0_2 = arith.constant 0 : index
    %c0_3 = arith.constant 0 : index
    %5 = vector.load %arg2[%c0_2, %c0_3] : memref<4x128xf32, #tpu.memory_space<vmem>>, vector<4x128xf32>
    %cst_4 = arith.constant 0.000000e+00 : f32
    %6 = vector.broadcast %cst_4 : f32 to vector<4x128xf32>
    %7 = arith.subf %6, %5 : vector<4x128xf32>
    %cst_5 = arith.constant 1.000000e-07 : f32
    %8 = vector.broadcast %cst_5 : f32 to vector<4x128xf32>
    %9 = arith.addf %4, %8 : vector<4x128xf32>
    %10 = math.log %9 : vector<4x128xf32>
    %11 = arith.mulf %7, %10 : vector<4x128xf32>
    %cst_6 = arith.constant 0.000000e+00 : f32
    %12 = vector.broadcast %cst_6 : f32 to vector<4x128xf32>
    %13 = arith.cmpf ogt, %11, %12 : vector<4x128xf32>
    %cst_7 = arith.constant 0.000000e+00 : f32
    %14 = vector.broadcast %cst_7 : f32 to vector<4x128xf32>
    %15 = arith.select %13, %11, %14 : vector<4x128xi1>, vector<4x128xf32>
    %cst_8 = arith.constant dense<0.000000e+00> : vector<128xf32>
    %16 = vector.multi_reduction <add>, %15, %cst_8 [0] : vector<4x128xf32> to vector<128xf32>
    %17 = vector.shape_cast %16 : vector<128xf32> to vector<1x128xf32>
    %c0_9 = arith.constant 0 : index
    %c0_10 = arith.constant 0 : index
    %c0_11 = arith.constant 0 : index
    %18 = vector.load %arg3[%c0_9, %c0_10, %c0_11] : memref<1x1x128xf32, #tpu.memory_space<vmem>>, vector<1x1x128xf32>
    %19 = vector.shape_cast %18 : vector<1x1x128xf32> to vector<1x128xf32>
    %20 = vector.shape_cast %17 : vector<1x128xf32> to vector<1x1x128xf32>
    tpu.vector_store %arg3[%c0_9, %c0_10, %c0_11], %20 {strides = array<i32>} : memref<1x1x128xf32, #tpu.memory_space<vmem>>, vector<1x1x128xf32>,
    return
  }
  func.func @transform_0(%arg0: i32) -> (i32, i32) {
    %c0_i32 = arith.constant 0 : i32
    %c0_i32_0 = arith.constant 0 : i32
    return %arg0, %c0_i32 : i32, i32
  }
  func.func @transform_1(%arg0: i32) -> (i32, i32) {
    %c0_i32 = arith.constant 0 : i32
    %c0_i32_0 = arith.constant 0 : i32
    return %arg0, %c0_i32 : i32, i32
  }
  func.func @transform_2(%arg0: i32) -> (i32, i32, i32) {
    %c0_i32 = arith.constant 0 : i32
    %c0_i32_0 = arith.constant 0 : i32
    %c0_i32_1 = arith.constant 0 : i32
    return %arg0, %c0_i32, %c0_i32_0 : i32, i32, i32
  }
}

</mosaic_0001>

<llo_original>
// kernel: tpu_custom_call.1
$region0: #{tpu_custom_call.1}
  #allocation0 [shape = 'u32[]', space=smem, size = 0x4, offset = 0x4, fixed_abs, tag = 'smem constant byte address 0x4 - core index']
  #allocation1 [shape = 'u32[72,128]{1,0:T(1,128)}', space=vmem, size = 0x9000, scoped, tag = 'internal scratch']
  %s0 = inlined_call_operand.hbm [shape: f32[4,128], index: 0, kind: input, shape index: {}]
  %s1 = inlined_call_operand.hbm [shape: f32[4,128], index: 1, kind: input, shape index: {}]
  %s2 = inlined_call_operand.hbm [shape: f32[1,1,128], index: 2, kind: output, shape index: {}]
  %s3 = sld [smem:[#allocation0]]
  $region26: #{tpu_custom_call.1} parent=0
    _
  %s5 = ssub.s32 1, %s3
  %s6 = scalar_select 0, %s5, %s3
  $region1: #{tpu_custom_call.1} parent=0
    #allocation2 [shape = 'u8[2048]{0}', space=vmem, size = 0x800, scoped, tag = 'input window, operand 0, single buffered']
    #allocation3 [shape = 's32[1]{0}', space=sflag, size = 0x4, scoped, tag = 'scoped memory for tpu_custom_call.1']
    #allocation4 [shape = 's32[1]{0}', space=sflag, size = 0x4, scoped, tag = 'scoped memory for tpu_custom_call.1']
    #allocation5 [shape = 'u8[2048]{0}', space=vmem, size = 0x800, scoped, tag = 'input window, operand 1, single buffered']
    #allocation6 [shape = 's32[1]{0}', space=sflag, size = 0x4, scoped, tag = 'scoped memory for tpu_custom_call.1']
    #allocation7 [shape = 'u8[512]{0}', space=vmem, size = 0x400, scoped, tag = 'output window, operand 0, single buffered']
    %7 = vsyncpa [#allocation3], 0
    %8 = vsyncpa [#allocation6], 0
    %9 = vsyncpa [#allocation4], 0
    // Predicated region
    $region2: #{tpu_custom_call.1} parent=1 // pred_check
      _
    $region3: #{tpu_custom_call.1} parent=1 // pred_check_branch
      %11 = sbr.rel (0) target = $region5
    $region4: #{tpu_custom_call.1} parent=1 // pred_region
      %13 = vsyncadd [#allocation3], 0
      %s15 = sshll.u32 %s0, 4
      %s16 = int_to_ptr.hbm [resolvable:$true] %s15
      %s17 = sshll.u32 [#allocation2], 4
      %s18 = int_to_ptr.vmem [resolvable:$true] %s17
      %20 = dma.hbm_to_vmem [thread:$0]  %s16, 64, %s18, [#allocation3]
    $region5: #{tpu_custom_call.1} parent=1 // pred_fallthru
      _
    // Predicated region
    $region6: #{tpu_custom_call.1} parent=1 // pred_check
      _
    $region7: #{tpu_custom_call.1} parent=1 // pred_check_branch
      %22 = sbr.rel (0) target = $region9
    $region8: #{tpu_custom_call.1} parent=1 // pred_region
      %24 = vsyncadd [#allocation6], 0
      %s26 = sshll.u32 %s1, 4
      %s27 = int_to_ptr.hbm [resolvable:$true] %s26
      %s28 = sshll.u32 [#allocation5], 4
      %s29 = int_to_ptr.vmem [resolvable:$true] %s28
      %31 = dma.hbm_to_vmem [thread:$0]  %s27, 64, %s29, [#allocation6]
    $region9: #{tpu_custom_call.1} parent=1 // pred_fallthru
      _
    // Predicated region
    $region10: #{tpu_custom_call.1} parent=1 // pred_check
      _
    $region11: #{tpu_custom_call.1} parent=1 // pred_check_branch
      %33 = sbr.rel (0) target = $region13
    $region12: #{tpu_custom_call.1} parent=1 // pred_region
      %35 = dma.done [#allocation3], 64
    $region13: #{tpu_custom_call.1} parent=1 // pred_fallthru
      _
    // Predicated region
    $region14: #{tpu_custom_call.1} parent=1 // pred_check
      _
    $region15: #{tpu_custom_call.1} parent=1 // pred_check_branch
      %37 = sbr.rel (0) target = $region17
    $region16: #{tpu_custom_call.1} parent=1 // pred_region
      %39 = dma.done [#allocation6], 64
    $region17: #{tpu_custom_call.1} parent=1 // pred_fallthru
      _
    %v40 = vld [vmem:[#allocation2] sm:$0xf]
    %v41 = vmax.f32 %v40, 0.0
    %v42 = vmin.f32 %v41, 1.0
    %v43 = vld [vmem:[#allocation5] sm:$0xf]
    %v44 = vsub.f32 0.0, %v43
    %v45 = vadd.f32 %v42, 1e-07
    %v46 = vlog2.pop %v45
    %v47 = vmul.f32 %v46, 0.6931472
    %v48 = vmul.f32 %v44, %v47
    %vm49 = vcmp.gt.f32.partialorder %v48, 0.0
    %v50 = vsel %vm49, %v48, 0.0
    %vm51 = vcmask 1043456
    %v52 = vsel %vm51, %v50, 0.0
    %v53 = vrot.slane %v52, 4
    %v54 = vadd.f32 %v52, %v53
    %v55 = vrot.slane %v54, 2
    %v56 = vadd.f32 %v54, %v55
    %v57 = vrot.slane %v56, 1
    %v58 = vadd.f32 %v56, %v57
    %59 = vst [vmem:[#allocation7] sm:$0x1] %v58
    // Predicated region
    $region18: #{tpu_custom_call.1} parent=1 // pred_check
      _
    $region19: #{tpu_custom_call.1} parent=1 // pred_check_branch
      %61 = sbr.rel (0) target = $region21
    $region20: #{tpu_custom_call.1} parent=1 // pred_region
      %63 = vsyncadd [#allocation4], 0
      %s65 = sshll.u32 [#allocation7], 4
      %s66 = int_to_ptr.vmem [resolvable:$true] %s65
      %s67 = sshll.u32 %s2, 4
      %s68 = int_to_ptr.hbm [resolvable:$true] %s67
      %70 = dma.vmem_to_hbm [thread:$0]  %s66, 16, %s68, [#allocation4]
    $region21: #{tpu_custom_call.1} parent=1 // pred_fallthru
      _
    // Predicated region
    $region22: #{tpu_custom_call.1} parent=1 // pred_check
      _
    $region23: #{tpu_custom_call.1} parent=1 // pred_check_branch
      %72 = sbr.rel (0) target = $region25
    $region24: #{tpu_custom_call.1} parent=1 // pred_region
      %74 = dma.done [#allocation4], 16
    $region25: #{tpu_custom_call.1} parent=1 // pred_fallthru
      _
    %75 = vsyncpa [#allocation3], 1
    %76 = vsyncpa [#allocation6], 1
    %77 = vsyncpa [#allocation4], 1

</llo_original>
